<compile_context>
chip_gen: v5e
topology: v5e:2x2
jax: 0.10.0
libtpu: 0.0.40
codegen_flags: <defaults>
</compile_context>

<pallas_src>
import functools

import numpy as np
import jax
import jax.numpy as jnp
from jax.experimental import pallas as pl
from jax.experimental.pallas import tpu as pltpu
from jax.scipy.special import ndtri


def _round_up(x, m):
    return ((x + m - 1) // m) * m


def _default_num_chunks():
    # 2 chunks only help on chips with 2 TensorCores (v7x); on v5e/v6e the
    # extra chunk is pure overhead.
    try:
        kind = jax.devices()[0].device_kind.lower()
    except Exception:
        return 1
    return 2 if ("v7" in kind or "tpu7" in kind) else 1


def _ice_loss_kernel(q_ref, inp_ref, tgt_ref, out_ref, err_ref, acc_ref, *,
                     num_bins, n_valid, tile_rows, steps_per_chunk,
                     use_bf16_exp):
    """Accumulate per-bin, per-lane partial sums of exp(-(err - q_b)^2 / 32).

    q_ref   : (num_bins,)      f32 SMEM  — quantiles as scalars
    inp_ref : (tile_rows, 128) f32 VMEM  — lane-dense input tile
    tgt_ref : (tile_rows, 128) f32 VMEM  — lane-dense target tile
    out_ref : (bins_pad, 1)    f32 VMEM  — per-chunk, lane-reduced partial sums
    err_ref : (tile_rows, 128) f32 VMEM scratch
    acc_ref : (bins_pad, 128)  f32 VMEM scratch — per-lane accumulator
    """
    c = pl.program_id(0)                 # parallel chunk axis
    k = pl.program_id(1)                 # reduction ("arbitrary") axis

    @pl.when(k == 0)
    def _():
        acc_ref[...] = jnp.zeros_like(acc_ref)

    # Fused diff: one VPU op, err tile stays resident in VMEM scratch.
    err_ref[...] = inp_ref[...] - tgt_ref[...]

    # In-kernel tail masking.  `block` is the *intended* (unclamped) block
    # index; duplicate tail blocks (from the clamped index_map) and the ragged
    # last block get the 1e19 sentinel:  (1e19)^2 ~ 1e38 stays finite in f32
    # and exp(-1e38/32) == 0 exactly.  Flat-index math is int32 (fine for
    # N < 2^31 elements).
    tile_elems = tile_rows * 128
    block = c * steps_per_chunk + k
    tile_start = block * tile_elems

    @pl.when(tile_start + tile_elems > n_valid)
    def _():
        row_i = jax.lax.broadcasted_iota(jnp.int32, err_ref.shape, 0)
        lane_i = jax.lax.broadcasted_iota(jnp.int32, err_ref.shape, 1)
        flat = tile_start + row_i * 128 + lane_i
        err_ref[...] = jnp.where(flat < n_valid, err_ref[...], 1e19)

    # Static unrolled loop over the real bins only (EUP work on real bins only).
    for b in range(num_bins):
        d = err_ref[...] - q_ref[b]
        # -0.5 * ((err - q) / 4)^2 == -(err - q)^2 / 32
        arg = d * d * (-1.0 / 32.0)
        if use_bf16_exp:
            # ~2x EUP throughput on v6e/v7x; ~3 significant digits.
            contrib = jnp.exp(arg.astype(jnp.bfloat16)).astype(jnp.float32)
        else:
            contrib = jnp.exp(arg)
        acc_ref[b:b + 1, :] += jnp.sum(contrib, axis=0, keepdims=True)

    # Write the (lane-reduced) chunk result once, at the last reduction step.
    @pl.when(k == pl.num_programs(1) - 1)
    def _():
        out_ref[...] = jnp.sum(acc_ref[...], axis=1, keepdims=True)


def make_quantiles(max_bins, mu=0.0, sigma=1.0):
    p = jnp.arange(1, max_bins + 1, dtype=jnp.float32) / (max_bins + 1)
    return (mu + sigma * ndtri(p)).astype(jnp.float32)


def ice_loss_pallas(inp, target, quantiles, *, max_tile_rows=2048,
                    num_chunks=None, use_bf16_exp=False):
    assert max_tile_rows % 8 == 0
    x = inp.reshape(-1).astype(jnp.float32)
    t = target.reshape(-1).astype(jnp.float32)
    n = int(x.shape[0])                          # true element count (static)
    max_bins = int(quantiles.shape[0])
    bins_pad = _round_up(max_bins, 8)

    if num_chunks is None:
        num_chunks = _default_num_chunks()

    # Lane-dense (rows, 128) view.  The reshape is metadata-only when
    # n % 128 == 0; otherwise pad the flat tail by <= 127 elements (those
    # elements are masked in-kernel, so the pad value is irrelevant).
    rem = n % 128
    if rem:
        pad = 128 - rem
        x = jnp.concatenate([x, jnp.zeros((pad,), jnp.float32)])
        t = jnp.concatenate([t, jnp.zeros((pad,), jnp.float32)])
    rows = x.shape[0] // 128
    x2 = x.reshape(rows, 128)
    t2 = t.reshape(rows, 128)

    # Tile / grid geometry.  The last block may be ragged (Pallas pads it with
    # unspecified values, masked in-kernel); surplus grid steps from chunk
    # balancing are clamped to the last block and fully masked.
    if rows <= max_tile_rows:
        tile_rows = rows                          # single block == full extent
    else:
        tile_rows = max_tile_rows                 # multiple of 8
    steps_total = -(-rows // tile_rows)
    chunks = max(1, min(num_chunks, steps_total))  # parallel axis (2 TCs on v7x)
    steps_per_chunk = -(-steps_total // chunks)    # identical per-chunk steps
    last_block = steps_total - 1

    kernel = functools.partial(
        _ice_loss_kernel,
        num_bins=max_bins, n_valid=n, tile_rows=tile_rows,
        steps_per_chunk=steps_per_chunk, use_bf16_exp=use_bf16_exp)

    def data_map(c, k):
        return (jnp.minimum(c * steps_per_chunk + k, last_block), 0)

    partials = pl.pallas_call(
        kernel,
        out_shape=jax.ShapeDtypeStruct((chunks, bins_pad, 1), jnp.float32),
        grid_spec=pltpu.PrefetchScalarGridSpec(
            num_scalar_prefetch=0,
            grid=(chunks, steps_per_chunk),
            in_specs=[
                pl.BlockSpec(memory_space=pltpu.MemorySpace.SMEM),   # quantiles
                pl.BlockSpec((tile_rows, 128), data_map),            # input
                pl.BlockSpec((tile_rows, 128), data_map),            # target
            ],
            out_specs=pl.BlockSpec((None, bins_pad, 1), lambda c, k: (c, 0, 0)),
            scratch_shapes=[
                pltpu.VMEM((tile_rows, 128), jnp.float32),   # err tile
                pltpu.VMEM((bins_pad, 128), jnp.float32),    # per-lane accumulator
            ],
        ),
        compiler_params=pltpu.CompilerParams(
            dimension_semantics=("parallel", "arbitrary")),
    )(quantiles.astype(jnp.float32), x2, t2)

    # Tiny epilogue in XLA: sum the (chunks, max_bins) partials, -sum(log(.)).
    distro = partials[:, :max_bins, 0].sum(axis=0)   # (max_bins,)
    return -jnp.sum(jnp.log(distro))


def ice_loss_ref(inp, target, quantiles):
    err = inp.reshape(-1) - target.reshape(-1)
    effect = (err[:, None] - quantiles[None, :]) / 4.0
    distro = jnp.exp(-0.5 * effect ** 2).sum(0)
    return -jnp.log(distro).sum()


if __name__ == "__main__":
    max_bins = 16
    quantiles = make_quantiles(max_bins, mu=0.0, sigma=1.0)   # deterministic "parameter"

    key = jax.random.PRNGKey(0)
    k1, k2 = jax.random.split(key)
    x = jax.random.normal(k1, (2, 4, 16, 16), dtype=jnp.float32)   # NCHW-like input
    t = jax.random.normal(k2, (2, 4, 16, 16), dtype=jnp.float32)

    loss = jax.block_until_ready(ice_loss_pallas(x, t, quantiles))
    ref = jax.block_until_ready(ice_loss_ref(x, t, quantiles))
    np.testing.assert_allclose(np.asarray(loss), np.asarray(ref), rtol=1e-4, atol=1e-4)

    print("KERNEL_OK")
</pallas_src>

<mosaic_0001>
module attributes {stable_mosaic.version = 11 : i64} {
  func.func @_ice_loss_kernel(%arg0: i32, %arg1: i32, %arg2: memref<16xf32, #tpu.memory_space<smem>>, %arg3: memref<16x128xf32, #tpu.memory_space<vmem>>, %arg4: memref<16x128xf32, #tpu.memory_space<vmem>>, %arg5: memref<1x16x1xf32, #tpu.memory_space<vmem>>, %arg6: memref<16x128xf32, #tpu.memory_space<vmem>>, %arg7: memref<16x128xf32, #tpu.memory_space<vmem>>) attributes {dimension_semantics = [#tpu.dimension_semantics<parallel>, #tpu.dimension_semantics<arbitrary>], iteration_bounds = array<i64: 1, 1>, scalar_prefetch = 0 : i64, scratch_operands = 2 : i64, tpu.core_type = #tpu.core_type<tc>, window_params = [{transform_indices = @transform_0, window_bounds = array<i64: 16>}, {transform_indices = @transform_1, window_bounds = array<i64: 16, 128>}, {transform_indices = @transform_2, window_bounds = array<i64: 16, 128>}, {transform_indices = @transform_3, window_bounds = array<i64: 1, 16, 1>}]} {
    %c0_i32 = arith.constant 0 : i32
    %0 = arith.cmpi eq, %arg1, %c0_i32 : i32
    %1 = arith.extui %0 : i1 to i32
    %c0_i32_0 = arith.constant 0 : i32
    %2 = arith.cmpi ne, %1, %c0_i32_0 : i32
    scf.if %2 {
      %cst_139 = arith.constant 0.000000e+00 : f32
      %225 = vector.broadcast %cst_139 : f32 to vector<16x128xf32>
      %c0_140 = arith.constant 0 : index
      %c0_141 = arith.constant 0 : index
      %226 = vector.load %arg7[%c0_140, %c0_141] : memref<16x128xf32, #tpu.memory_space<vmem>>, vector<16x128xf32>
      tpu.vector_store %arg7[%c0_140, %c0_141], %225 {strides = array<i32>} : memref<16x128xf32, #tpu.memory_space<vmem>>, vector<16x128xf32>,
    } else {
    }
    %c0 = arith.constant 0 : index
    %c0_1 = arith.constant 0 : index
    %3 = vector.load %arg3[%c0, %c0_1] : memref<16x128xf32, #tpu.memory_space<vmem>>, vector<16x128xf32>
    %c0_2 = arith.constant 0 : index
    %c0_3 = arith.constant 0 : index
    %4 = vector.load %arg4[%c0_2, %c0_3] : memref<16x128xf32, #tpu.memory_space<vmem>>, vector<16x128xf32>
    %5 = arith.subf %3, %4 : vector<16x128xf32>
    %c0_4 = arith.constant 0 : index
    %c0_5 = arith.constant 0 : index
    %6 = vector.load %arg6[%c0_4, %c0_5] : memref<16x128xf32, #tpu.memory_space<vmem>>, vector<16x128xf32>
    tpu.vector_store %arg6[%c0_4, %c0_5], %5 {strides = array<i32>} : memref<16x128xf32, #tpu.memory_space<vmem>>, vector<16x128xf32>,
    %c1_i32 = arith.constant 1 : i32
    %7 = arith.muli %arg0, %c1_i32 : i32
    %8 = arith.addi %7, %arg1 : i32
    %c2048_i32 = arith.constant 2048 : i32
    %9 = arith.muli %8, %c2048_i32 : i32
    %c2048_i32_6 = arith.constant 2048 : i32
    %10 = arith.addi %9, %c2048_i32_6 : i32
    %c2048_i32_7 = arith.constant 2048 : i32
    %11 = arith.cmpi sgt, %10, %c2048_i32_7 : i32
    %12 = arith.extui %11 : i1 to i32
    %c0_i32_8 = arith.constant 0 : i32
    %13 = arith.cmpi ne, %12, %c0_i32_8 : i32
    scf.if %13 {
      %225 = tpu.iota {dimensions = array<i32: 0>} : vector<16x128xi32>
      %226 = tpu.iota {dimensions = array<i32: 1>} : vector<16x128xi32>
      %c128_i32 = arith.constant 128 : i32
      %227 = vector.broadcast %c128_i32 : i32 to vector<16x128xi32>
      %228 = arith.muli %225, %227 : vector<16x128xi32>
      %229 = vector.broadcast %9 : i32 to vector<16x128xi32>
      %230 = arith.addi %229, %228 : vector<16x128xi32>
      %231 = arith.addi %230, %226 : vector<16x128xi32>
      %c2048_i32_139 = arith.constant 2048 : i32
      %232 = vector.broadcast %c2048_i32_139 : i32 to vector<16x128xi32>
      %233 = arith.cmpi slt, %231, %232 : vector<16x128xi32>
      %c0_140 = arith.constant 0 : index
      %c0_141 = arith.constant 0 : index
      %234 = vector.load %arg6[%c0_140, %c0_141] : memref<16x128xf32, #tpu.memory_space<vmem>>, vector<16x128xf32>
      %cst_142 = arith.constant 9.99999998E+18 : f32
      %235 = vector.broadcast %cst_142 : f32 to vector<16x128xf32>
      %236 = arith.select %233, %234, %235 : vector<16x128xi1>, vector<16x128xf32>
      %c0_143 = arith.constant 0 : index
      %c0_144 = arith.constant 0 : index
      %237 = vector.load %arg6[%c0_143, %c0_144] : memref<16x128xf32, #tpu.memory_space<vmem>>, vector<16x128xf32>
      tpu.vector_store %arg6[%c0_143, %c0_144], %236 {strides = array<i32>} : memref<16x128xf32, #tpu.memory_space<vmem>>, vector<16x128xf32>,
    } else {
    }
    %c0_9 = arith.constant 0 : index
    %c0_10 = arith.constant 0 : index
    %14 = vector.load %arg6[%c0_9, %c0_10] : memref<16x128xf32, #tpu.memory_space<vmem>>, vector<16x128xf32>
    %c0_11 = arith.constant 0 : index
    %15 = memref.load %arg2[%c0_11] : memref<16xf32, #tpu.memory_space<smem>>
    %16 = vector.broadcast %15 : f32 to vector<16x128xf32>
    %17 = arith.subf %14, %16 : vector<16x128xf32>
    %18 = arith.mulf %17, %17 : vector<16x128xf32>
    %cst = arith.constant -3.125000e-02 : f32
    %19 = vector.broadcast %cst : f32 to vector<16x128xf32>
    %20 = arith.mulf %18, %19 : vector<16x128xf32>
    %21 = math.exp %20 : vector<16x128xf32>
    %c0_12 = arith.constant 0 : index
    %c0_13 = arith.constant 0 : index
    %22 = vector.load %arg7[%c0_12, %c0_13] : memref<16x128xf32, #tpu.memory_space<vmem>>, vector<1x128xf32>
    %cst_14 = arith.constant dense<0.000000e+00> : vector<128xf32>
    %23 = vector.multi_reduction <add>, %21, %cst_14 [0] : vector<16x128xf32> to vector<128xf32>
    %24 = vector.shape_cast %23 : vector<128xf32> to vector<1x128xf32>
    %25 = arith.addf %22, %24 : vector<1x128xf32>
    %c0_15 = arith.constant 0 : index
    %c0_16 = arith.constant 0 : index
    %26 = vector.load %arg7[%c0_15, %c0_16] : memref<16x128xf32, #tpu.memory_space<vmem>>, vector<1x128xf32>
    tpu.vector_store %arg7[%c0_15, %c0_16], %25 {strides = array<i32>} : memref<16x128xf32, #tpu.memory_space<vmem>>, vector<1x128xf32>,
    %c0_17 = arith.constant 0 : index
    %c0_18 = arith.constant 0 : index
    %27 = vector.load %arg6[%c0_17, %c0_18] : memref<16x128xf32, #tpu.memory_space<vmem>>, vector<16x128xf32>
    %c1 = arith.constant 1 : index
    %28 = memref.load %arg2[%c1] : memref<16xf32, #tpu.memory_space<smem>>
    %29 = vector.broadcast %28 : f32 to vector<16x128xf32>
    %30 = arith.subf %27, %29 : vector<16x128xf32>
    %31 = arith.mulf %30, %30 : vector<16x128xf32>
    %cst_19 = arith.constant -3.125000e-02 : f32
    %32 = vector.broadcast %cst_19 : f32 to vector<16x128xf32>
    %33 = arith.mulf %31, %32 : vector<16x128xf32>
    %34 = math.exp %33 : vector<16x128xf32>
    %c1_20 = arith.constant 1 : index
    %c0_21 = arith.constant 0 : index
    %35 = vector.load %arg7[%c1_20, %c0_21] : memref<16x128xf32, #tpu.memory_space<vmem>>, vector<1x128xf32>
    %cst_22 = arith.constant dense<0.000000e+00> : vector<128xf32>
    %36 = vector.multi_reduction <add>, %34, %cst_22 [0] : vector<16x128xf32> to vector<128xf32>
    %37 = vector.shape_cast %36 : vector<128xf32> to vector<1x128xf32>
    %38 = arith.addf %35, %37 : vector<1x128xf32>
    %c1_23 = arith.constant 1 : index
    %c0_24 = arith.constant 0 : index
    %39 = vector.load %arg7[%c1_23, %c0_24] : memref<16x128xf32, #tpu.memory_space<vmem>>, vector<1x128xf32>
    tpu.vector_store %arg7[%c1_23, %c0_24], %38 {strides = array<i32>} : memref<16x128xf32, #tpu.memory_space<vmem>>, vector<1x128xf32>,
    %c0_25 = arith.constant 0 : index
    %c0_26 = arith.constant 0 : index
    %40 = vector.load %arg6[%c0_25, %c0_26] : memref<16x128xf32, #tpu.memory_space<vmem>>, vector<16x128xf32>
    %c2 = arith.constant 2 : index
    %41 = memref.load %arg2[%c2] : memref<16xf32, #tpu.memory_space<smem>>
    %42 = vector.broadcast %41 : f32 to vector<16x128xf32>
    %43 = arith.subf %40, %42 : vector<16x128xf32>
    %44 = arith.mulf %43, %43 : vector<16x128xf32>
    %cst_27 = arith.constant -3.125000e-02 : f32
    %45 = vector.broadcast %cst_27 : f32 to vector<16x128xf32>
    %46 = arith.mulf %44, %45 : vector<16x128xf32>
    %47 = math.exp %46 : vector<16x128xf32>
    %c2_28 = arith.constant 2 : index
    %c0_29 = arith.constant 0 : index
    %48 = vector.load %arg7[%c2_28, %c0_29] : memref<16x128xf32, #tpu.memory_space<vmem>>, vector<1x128xf32>
    %cst_30 = arith.constant dense<0.000000e+00> : vector<128xf32>
    %49 = vector.multi_reduction <add>, %47, %cst_30 [0] : vector<16x128xf32> to vector<128xf32>
    %50 = vector.shape_cast %49 : vector<128xf32> to vector<1x128xf32>
    %51 = arith.addf %48, %50 : vector<1x128xf32>
    %c2_31 = arith.constant 2 : index
    %c0_32 = arith.constant 0 : index
    %52 = vector.load %arg7[%c2_31, %c0_32] : memref<16x128xf32, #tpu.memory_space<vmem>>, vector<1x128xf32>
    tpu.vector_store %arg7[%c2_31, %c0_32], %51 {strides = array<i32>} : memref<16x128xf32, #tpu.memory_space<vmem>>, vector<1x128xf32>,
    %c0_33 = arith.constant 0 : index
    %c0_34 = arith.constant 0 : index
    %53 = vector.load %arg6[%c0_33, %c0_34] : memref<16x128xf32, #tpu.memory_space<vmem>>, vector<16x128xf32>
    %c3 = arith.constant 3 : index
    %54 = memref.load %arg2[%c3] : memref<16xf32, #tpu.memory_space<smem>>
    %55 = vector.broadcast %54 : f32 to vector<16x128xf32>
    %56 = arith.subf %53, %55 : vector<16x128xf32>
    %57 = arith.mulf %56, %56 : vector<16x128xf32>
    %cst_35 = arith.constant -3.125000e-02 : f32
    %58 = vector.broadcast %cst_35 : f32 to vector<16x128xf32>
    %59 = arith.mulf %57, %58 : vector<16x128xf32>
    %60 = math.exp %59 : vector<16x128xf32>
    %c3_36 = arith.constant 3 : index
    %c0_37 = arith.constant 0 : index
    %61 = vector.load %arg7[%c3_36, %c0_37] : memref<16x128xf32, #tpu.memory_space<vmem>>, vector<1x128xf32>
    %cst_38 = arith.constant dense<0.000000e+00> : vector<128xf32>
    %62 = vector.multi_reduction <add>, %60, %cst_38 [0] : vector<16x128xf32> to vector<128xf32>
    %63 = vector.shape_cast %62 : vector<128xf32> to vector<1x128xf32>
    %64 = arith.addf %61, %63 : vector<1x128xf32>
    %c3_39 = arith.constant 3 : index
    %c0_40 = arith.constant 0 : index
    %65 = vector.load %arg7[%c3_39, %c0_40] : memref<16x128xf32, #tpu.memory_space<vmem>>, vector<1x128xf32>
    tpu.vector_store %arg7[%c3_39, %c0_40], %64 {strides = array<i32>} : memref<16x128xf32, #tpu.memory_space<vmem>>, vector<1x128xf32>,
    %c0_41 = arith.constant 0 : index
    %c0_42 = arith.constant 0 : index
    %66 = vector.load %arg6[%c0_41, %c0_42] : memref<16x128xf32, #tpu.memory_space<vmem>>, vector<16x128xf32>
    %c4 = arith.constant 4 : index
    %67 = memref.load %arg2[%c4] : memref<16xf32, #tpu.memory_space<smem>>
    %68 = vector.broadcast %67 : f32 to vector<16x128xf32>
    %69 = arith.subf %66, %68 : vector<16x128xf32>
    %70 = arith.mulf %69, %69 : vector<16x128xf32>
    %cst_43 = arith.constant -3.125000e-02 : f32
    %71 = vector.broadcast %cst_43 : f32 to vector<16x128xf32>
    %72 = arith.mulf %70, %71 : vector<16x128xf32>
    %73 = math.exp %72 : vector<16x128xf32>
    %c4_44 = arith.constant 4 : index
    %c0_45 = arith.constant 0 : index
    %74 = vector.load %arg7[%c4_44, %c0_45] : memref<16x128xf32, #tpu.memory_space<vmem>>, vector<1x128xf32>
    %cst_46 = arith.constant dense<0.000000e+00> : vector<128xf32>
    %75 = vector.multi_reduction <add>, %73, %cst_46 [0] : vector<16x128xf32> to vector<128xf32>
    %76 = vector.shape_cast %75 : vector<128xf32> to vector<1x128xf32>
    %77 = arith.addf %74, %76 : vector<1x128xf32>
    %c4_47 = arith.constant 4 : index
    %c0_48 = arith.constant 0 : index
    %78 = vector.load %arg7[%c4_47, %c0_48] : memref<16x128xf32, #tpu.memory_space<vmem>>, vector<1x128xf32>
    tpu.vector_store %arg7[%c4_47, %c0_48], %77 {strides = array<i32>} : memref<16x128xf32, #tpu.memory_space<vmem>>, vector<1x128xf32>,
    %c0_49 = arith.constant 0 : index
    %c0_50 = arith.constant 0 : index
    %79 = vector.load %arg6[%c0_49, %c0_50] : memref<16x128xf32, #tpu.memory_space<vmem>>, vector<16x128xf32>
    %c5 = arith.constant 5 : index
    %80 = memref.load %arg2[%c5] : memref<16xf32, #tpu.memory_space<smem>>
    %81 = vector.broadcast %80 : f32 to vector<16x128xf32>
    %82 = arith.subf %79, %81 : vector<16x128xf32>
    %83 = arith.mulf %82, %82 : vector<16x128xf32>
    %cst_51 = arith.constant -3.125000e-02 : f32
    %84 = vector.broadcast %cst_51 : f32 to vector<16x128xf32>
    %85 = arith.mulf %83, %84 : vector<16x128xf32>
    %86 = math.exp %85 : vector<16x128xf32>
    %c5_52 = arith.constant 5 : index
    %c0_53 = arith.constant 0 : index
    %87 = vector.load %arg7[%c5_52, %c0_53] : memref<16x128xf32, #tpu.memory_space<vmem>>, vector<1x128xf32>
    %cst_54 = arith.constant dense<0.000000e+00> : vector<128xf32>
    %88 = vector.multi_reduction <add>, %86, %cst_54 [0] : vector<16x128xf32> to vector<128xf32>
    %89 = vector.shape_cast %88 : vector<128xf32> to vector<1x128xf32>
    %90 = arith.addf %87, %89 : vector<1x128xf32>
    %c5_55 = arith.constant 5 : index
    %c0_56 = arith.constant 0 : index
    %91 = vector.load %arg7[%c5_55, %c0_56] : memref<16x128xf32, #tpu.memory_space<vmem>>, vector<1x128xf32>
    tpu.vector_store %arg7[%c5_55, %c0_56], %90 {strides = array<i32>} : memref<16x128xf32, #tpu.memory_space<vmem>>, vector<1x128xf32>,
    %c0_57 = arith.constant 0 : index
    %c0_58 = arith.constant 0 : index
    %92 = vector.load %arg6[%c0_57, %c0_58] : memref<16x128xf32, #tpu.memory_space<vmem>>, vector<16x128xf32>
    %c6 = arith.constant 6 : index
    %93 = memref.load %arg2[%c6] : memref<16xf32, #tpu.memory_space<smem>>
    %94 = vector.broadcast %93 : f32 to vector<16x128xf32>
    %95 = arith.subf %92, %94 : vector<16x128xf32>
    %96 = arith.mulf %95, %95 : vector<16x128xf32>
    %cst_59 = arith.constant -3.125000e-02 : f32
    %97 = vector.broadcast %cst_59 : f32 to vector<16x128xf32>
    %98 = arith.mulf %96, %97 : vector<16x128xf32>
    %99 = math.exp %98 : vector<16x128xf32>
    %c6_60 = arith.constant 6 : index
    %c0_61 = arith.constant 0 : index
    %100 = vector.load %arg7[%c6_60, %c0_61] : memref<16x128xf32, #tpu.memory_space<vmem>>, vector<1x128xf32>
    %cst_62 = arith.constant dense<0.000000e+00> : vector<128xf32>
    %101 = vector.multi_reduction <add>, %99, %cst_62 [0] : vector<16x128xf32> to vector<128xf32>
    %102 = vector.shape_cast %101 : vector<128xf32> to vector<1x128xf32>
    %103 = arith.addf %100, %102 : vector<1x128xf32>
    %c6_63 = arith.constant 6 : index
    %c0_64 = arith.constant 0 : index
    %104 = vector.load %arg7[%c6_63, %c0_64] : memref<16x128xf32, #tpu.memory_space<vmem>>, vector<1x128xf32>
    tpu.vector_store %arg7[%c6_63, %c0_64], %103 {strides = array<i32>} : memref<16x128xf32, #tpu.memory_space<vmem>>, vector<1x128xf32>,
    %c0_65 = arith.constant 0 : index
    %c0_66 = arith.constant 0 : index
    %105 = vector.load %arg6[%c0_65, %c0_66] : memref<16x128xf32, #tpu.memory_space<vmem>>, vector<16x128xf32>
    %c7 = arith.constant 7 : index
    %106 = memref.load %arg2[%c7] : memref<16xf32, #tpu.memory_space<smem>>
    %107 = vector.broadcast %106 : f32 to vector<16x128xf32>
    %108 = arith.subf %105, %107 : vector<16x128xf32>
    %109 = arith.mulf %108, %108 : vector<16x128xf32>
    %cst_67 = arith.constant -3.125000e-02 : f32
    %110 = vector.broadcast %cst_67 : f32 to vector<16x128xf32>
    %111 = arith.mulf %109, %110 : vector<16x128xf32>
    %112 = math.exp %111 : vector<16x128xf32>
    %c7_68 = arith.constant 7 : index
    %c0_69 = arith.constant 0 : index
    %113 = vector.load %arg7[%c7_68, %c0_69] : memref<16x128xf32, #tpu.memory_space<vmem>>, vector<1x128xf32>
    %cst_70 = arith.constant dense<0.000000e+00> : vector<128xf32>
    %114 = vector.multi_reduction <add>, %112, %cst_70 [0] : vector<16x128xf32> to vector<128xf32>
    %115 = vector.shape_cast %114 : vector<128xf32> to vector<1x128xf32>
    %116 = arith.addf %113, %115 : vector<1x128xf32>
    %c7_71 = arith.constant 7 : index
    %c0_72 = arith.constant 0 : index
    %117 = vector.load %arg7[%c7_71, %c0_72] : memref<16x128xf32, #tpu.memory_space<vmem>>, vector<1x128xf32>
    tpu.vector_store %arg7[%c7_71, %c0_72], %116 {strides = array<i32>} : memref<16x128xf32, #tpu.memory_space<vmem>>, vector<1x128xf32>,
    %c0_73 = arith.constant 0 : index
    %c0_74 = arith.constant 0 : index
    %118 = vector.load %arg6[%c0_73, %c0_74] : memref<16x128xf32, #tpu.memory_space<vmem>>, vector<16x128xf32>
    %c8 = arith.constant 8 : index
    %119 = memref.load %arg2[%c8] : memref<16xf32, #tpu.memory_space<smem>>
    %120 = vector.broadcast %119 : f32 to vector<16x128xf32>
    %121 = arith.subf %118, %120 : vector<16x128xf32>
    %122 = arith.mulf %121, %121 : vector<16x128xf32>
    %cst_75 = arith.constant -3.125000e-02 : f32
    %123 = vector.broadcast %cst_75 : f32 to vector<16x128xf32>
    %124 = arith.mulf %122, %123 : vector<16x128xf32>
    %125 = math.exp %124 : vector<16x128xf32>
    %c8_76 = arith.constant 8 : index
    %c0_77 = arith.constant 0 : index
    %126 = vector.load %arg7[%c8_76, %c0_77] : memref<16x128xf32, #tpu.memory_space<vmem>>, vector<1x128xf32>
    %cst_78 = arith.constant dense<0.000000e+00> : vector<128xf32>
    %127 = vector.multi_reduction <add>, %125, %cst_78 [0] : vector<16x128xf32> to vector<128xf32>
    %128 = vector.shape_cast %127 : vector<128xf32> to vector<1x128xf32>
    %129 = arith.addf %126, %128 : vector<1x128xf32>
    %c8_79 = arith.constant 8 : index
    %c0_80 = arith.constant 0 : index
    %130 = vector.load %arg7[%c8_79, %c0_80] : memref<16x128xf32, #tpu.memory_space<vmem>>, vector<1x128xf32>
    tpu.vector_store %arg7[%c8_79, %c0_80], %129 {strides = array<i32>} : memref<16x128xf32, #tpu.memory_space<vmem>>, vector<1x128xf32>,
    %c0_81 = arith.constant 0 : index
    %c0_82 = arith.constant 0 : index
    %131 = vector.load %arg6[%c0_81, %c0_82] : memref<16x128xf32, #tpu.memory_space<vmem>>, vector<16x128xf32>
    %c9 = arith.constant 9 : index
    %132 = memref.load %arg2[%c9] : memref<16xf32, #tpu.memory_space<smem>>
    %133 = vector.broadcast %132 : f32 to vector<16x128xf32>
    %134 = arith.subf %131, %133 : vector<16x128xf32>
    %135 = arith.mulf %134, %134 : vector<16x128xf32>
    %cst_83 = arith.constant -3.125000e-02 : f32
    %136 = vector.broadcast %cst_83 : f32 to vector<16x128xf32>
    %137 = arith.mulf %135, %136 : vector<16x128xf32>
    %138 = math.exp %137 : vector<16x128xf32>
    %c9_84 = arith.constant 9 : index
    %c0_85 = arith.constant 0 : index
    %139 = vector.load %arg7[%c9_84, %c0_85] : memref<16x128xf32, #tpu.memory_space<vmem>>, vector<1x128xf32>
    %cst_86 = arith.constant dense<0.000000e+00> : vector<128xf32>
    %140 = vector.multi_reduction <add>, %138, %cst_86 [0] : vector<16x128xf32> to vector<128xf32>
    %141 = vector.shape_cast %140 : vector<128xf32> to vector<1x128xf32>
    %142 = arith.addf %139, %141 : vector<1x128xf32>
    %c9_87 = arith.constant 9 : index
    %c0_88 = arith.constant 0 : index
    %143 = vector.load %arg7[%c9_87, %c0_88] : memref<16x128xf32, #tpu.memory_space<vmem>>, vector<1x128xf32>
    tpu.vector_store %arg7[%c9_87, %c0_88], %142 {strides = array<i32>} : memref<16x128xf32, #tpu.memory_space<vmem>>, vector<1x128xf32>,
    %c0_89 = arith.constant 0 : index
    %c0_90 = arith.constant 0 : index
    %144 = vector.load %arg6[%c0_89, %c0_90] : memref<16x128xf32, #tpu.memory_space<vmem>>, vector<16x128xf32>
    %c10 = arith.constant 10 : index
    %145 = memref.load %arg2[%c10] : memref<16xf32, #tpu.memory_space<smem>>
    %146 = vector.broadcast %145 : f32 to vector<16x128xf32>
    %147 = arith.subf %144, %146 : vector<16x128xf32>
    %148 = arith.mulf %147, %147 : vector<16x128xf32>
    %cst_91 = arith.constant -3.125000e-02 : f32
    %149 = vector.broadcast %cst_91 : f32 to vector<16x128xf32>
    %150 = arith.mulf %148, %149 : vector<16x128xf32>
    %151 = math.exp %150 : vector<16x128xf32>
    %c10_92 = arith.constant 10 : index
    %c0_93 = arith.constant 0 : index
    %152 = vector.load %arg7[%c10_92, %c0_93] : memref<16x128xf32, #tpu.memory_space<vmem>>, vector<1x128xf32>
    %cst_94 = arith.constant dense<0.000000e+00> : vector<128xf32>
    %153 = vector.multi_reduction <add>, %151, %cst_94 [0] : vector<16x128xf32> to vector<128xf32>
    %154 = vector.shape_cast %153 : vector<128xf32> to vector<1x128xf32>
    %155 = arith.addf %152, %154 : vector<1x128xf32>
    %c10_95 = arith.constant 10 : index
    %c0_96 = arith.constant 0 : index
    %156 = vector.load %arg7[%c10_95, %c0_96] : memref<16x128xf32, #tpu.memory_space<vmem>>, vector<1x128xf32>
    tpu.vector_store %arg7[%c10_95, %c0_96], %155 {strides = array<i32>} : memref<16x128xf32, #tpu.memory_space<vmem>>, vector<1x128xf32>,
    %c0_97 = arith.constant 0 : index
    %c0_98 = arith.constant 0 : index
    %157 = vector.load %arg6[%c0_97, %c0_98] : memref<16x128xf32, #tpu.memory_space<vmem>>, vector<16x128xf32>
    %c11 = arith.constant 11 : index
    %158 = memref.load %arg2[%c11] : memref<16xf32, #tpu.memory_space<smem>>
    %159 = vector.broadcast %158 : f32 to vector<16x128xf32>
    %160 = arith.subf %157, %159 : vector<16x128xf32>
    %161 = arith.mulf %160, %160 : vector<16x128xf32>
    %cst_99 = arith.constant -3.125000e-02 : f32
    %162 = vector.broadcast %cst_99 : f32 to vector<16x128xf32>
    %163 = arith.mulf %161, %162 : vector<16x128xf32>
    %164 = math.exp %163 : vector<16x128xf32>
    %c11_100 = arith.constant 11 : index
    %c0_101 = arith.constant 0 : index
    %165 = vector.load %arg7[%c11_100, %c0_101] : memref<16x128xf32, #tpu.memory_space<vmem>>, vector<1x128xf32>
    %cst_102 = arith.constant dense<0.000000e+00> : vector<128xf32>
    %166 = vector.multi_reduction <add>, %164, %cst_102 [0] : vector<16x128xf32> to vector<128xf32>
    %167 = vector.shape_cast %166 : vector<128xf32> to vector<1x128xf32>
    %168 = arith.addf %165, %167 : vector<1x128xf32>
    %c11_103 = arith.constant 11 : index
    %c0_104 = arith.constant 0 : index
    %169 = vector.load %arg7[%c11_103, %c0_104] : memref<16x128xf32, #tpu.memory_space<vmem>>, vector<1x128xf32>
    tpu.vector_store %arg7[%c11_103, %c0_104], %168 {strides = array<i32>} : memref<16x128xf32, #tpu.memory_space<vmem>>, vector<1x128xf32>,
    %c0_105 = arith.constant 0 : index
    %c0_106 = arith.constant 0 : index
    %170 = vector.load %arg6[%c0_105, %c0_106] : memref<16x128xf32, #tpu.memory_space<vmem>>, vector<16x128xf32>
    %c12 = arith.constant 12 : index
    %171 = memref.load %arg2[%c12] : memref<16xf32, #tpu.memory_space<smem>>
    %172 = vector.broadcast %171 : f32 to vector<16x128xf32>
    %173 = arith.subf %170, %172 : vector<16x128xf32>
    %174 = arith.mulf %173, %173 : vector<16x128xf32>
    %cst_107 = arith.constant -3.125000e-02 : f32
    %175 = vector.broadcast %cst_107 : f32 to vector<16x128xf32>
    %176 = arith.mulf %174, %175 : vector<16x128xf32>
    %177 = math.exp %176 : vector<16x128xf32>
    %c12_108 = arith.constant 12 : index
    %c0_109 = arith.constant 0 : index
    %178 = vector.load %arg7[%c12_108, %c0_109] : memref<16x128xf32, #tpu.memory_space<vmem>>, vector<1x128xf32>
    %cst_110 = arith.constant dense<0.000000e+00> : vector<128xf32>
    %179 = vector.multi_reduction <add>, %177, %cst_110 [0] : vector<16x128xf32> to vector<128xf32>
    %180 = vector.shape_cast %179 : vector<128xf32> to vector<1x128xf32>
    %181 = arith.addf %178, %180 : vector<1x128xf32>
    %c12_111 = arith.constant 12 : index
    %c0_112 = arith.constant 0 : index
    %182 = vector.load %arg7[%c12_111, %c0_112] : memref<16x128xf32, #tpu.memory_space<vmem>>, vector<1x128xf32>
    tpu.vector_store %arg7[%c12_111, %c0_112], %181 {strides = array<i32>} : memref<16x128xf32, #tpu.memory_space<vmem>>, vector<1x128xf32>,
    %c0_113 = arith.constant 0 : index
    %c0_114 = arith.constant 0 : index
    %183 = vector.load %arg6[%c0_113, %c0_114] : memref<16x128xf32, #tpu.memory_space<vmem>>, vector<16x128xf32>
    %c13 = arith.constant 13 : index
    %184 = memref.load %arg2[%c13] : memref<16xf32, #tpu.memory_space<smem>>
    %185 = vector.broadcast %184 : f32 to vector<16x128xf32>
    %186 = arith.subf %183, %185 : vector<16x128xf32>
    %187 = arith.mulf %186, %186 : vector<16x128xf32>
    %cst_115 = arith.constant -3.125000e-02 : f32
    %188 = vector.broadcast %cst_115 : f32 to vector<16x128xf32>
    %189 = arith.mulf %187, %188 : vector<16x128xf32>
    %190 = math.exp %189 : vector<16x128xf32>
    %c13_116 = arith.constant 13 : index
    %c0_117 = arith.constant 0 : index
    %191 = vector.load %arg7[%c13_116, %c0_117] : memref<16x128xf32, #tpu.memory_space<vmem>>, vector<1x128xf32>
    %cst_118 = arith.constant dense<0.000000e+00> : vector<128xf32>
    %192 = vector.multi_reduction <add>, %190, %cst_118 [0] : vector<16x128xf32> to vector<128xf32>
    %193 = vector.shape_cast %192 : vector<128xf32> to vector<1x128xf32>
    %194 = arith.addf %191, %193 : vector<1x128xf32>
    %c13_119 = arith.constant 13 : index
    %c0_120 = arith.constant 0 : index
    %195 = vector.load %arg7[%c13_119, %c0_120] : memref<16x128xf32, #tpu.memory_space<vmem>>, vector<1x128xf32>
    tpu.vector_store %arg7[%c13_119, %c0_120], %194 {strides = array<i32>} : memref<16x128xf32, #tpu.memory_space<vmem>>, vector<1x128xf32>,
    %c0_121 = arith.constant 0 : index
    %c0_122 = arith.constant 0 : index
    %196 = vector.load %arg6[%c0_121, %c0_122] : memref<16x128xf32, #tpu.memory_space<vmem>>, vector<16x128xf32>
    %c14 = arith.constant 14 : index
    %197 = memref.load %arg2[%c14] : memref<16xf32, #tpu.memory_space<smem>>
    %198 = vector.broadcast %197 : f32 to vector<16x128xf32>
    %199 = arith.subf %196, %198 : vector<16x128xf32>
    %200 = arith.mulf %199, %199 : vector<16x128xf32>
    %cst_123 = arith.constant -3.125000e-02 : f32
    %201 = vector.broadcast %cst_123 : f32 to vector<16x128xf32>
    %202 = arith.mulf %200, %201 : vector<16x128xf32>
    %203 = math.exp %202 : vector<16x128xf32>
    %c14_124 = arith.constant 14 : index
    %c0_125 = arith.constant 0 : index
    %204 = vector.load %arg7[%c14_124, %c0_125] : memref<16x128xf32, #tpu.memory_space<vmem>>, vector<1x128xf32>
    %cst_126 = arith.constant dense<0.000000e+00> : vector<128xf32>
    %205 = vector.multi_reduction <add>, %203, %cst_126 [0] : vector<16x128xf32> to vector<128xf32>
    %206 = vector.shape_cast %205 : vector<128xf32> to vector<1x128xf32>
    %207 = arith.addf %204, %206 : vector<1x128xf32>
    %c14_127 = arith.constant 14 : index
    %c0_128 = arith.constant 0 : index
    %208 = vector.load %arg7[%c14_127, %c0_128] : memref<16x128xf32, #tpu.memory_space<vmem>>, vector<1x128xf32>
    tpu.vector_store %arg7[%c14_127, %c0_128], %207 {strides = array<i32>} : memref<16x128xf32, #tpu.memory_space<vmem>>, vector<1x128xf32>,
    %c0_129 = arith.constant 0 : index
    %c0_130 = arith.constant 0 : index
    %209 = vector.load %arg6[%c0_129, %c0_130] : memref<16x128xf32, #tpu.memory_space<vmem>>, vector<16x128xf32>
    %c15 = arith.constant 15 : index
    %210 = memref.load %arg2[%c15] : memref<16xf32, #tpu.memory_space<smem>>
    %211 = vector.broadcast %210 : f32 to vector<16x128xf32>
    %212 = arith.subf %209, %211 : vector<16x128xf32>
    %213 = arith.mulf %212, %212 : vector<16x128xf32>
    %cst_131 = arith.constant -3.125000e-02 : f32
    %214 = vector.broadcast %cst_131 : f32 to vector<16x128xf32>
    %215 = arith.mulf %213, %214 : vector<16x128xf32>
    %216 = math.exp %215 : vector<16x128xf32>
    %c15_132 = arith.constant 15 : index
    %c0_133 = arith.constant 0 : index
    %217 = vector.load %arg7[%c15_132, %c0_133] : memref<16x128xf32, #tpu.memory_space<vmem>>, vector<1x128xf32>
    %cst_134 = arith.constant dense<0.000000e+00> : vector<128xf32>
    %218 = vector.multi_reduction <add>, %216, %cst_134 [0] : vector<16x128xf32> to vector<128xf32>
    %219 = vector.shape_cast %218 : vector<128xf32> to vector<1x128xf32>
    %220 = arith.addf %217, %219 : vector<1x128xf32>
    %c15_135 = arith.constant 15 : index
    %c0_136 = arith.constant 0 : index
    %221 = vector.load %arg7[%c15_135, %c0_136] : memref<16x128xf32, #tpu.memory_space<vmem>>, vector<1x128xf32>
    tpu.vector_store %arg7[%c15_135, %c0_136], %220 {strides = array<i32>} : memref<16x128xf32, #tpu.memory_space<vmem>>, vector<1x128xf32>,
    %c0_i32_137 = arith.constant 0 : i32
    %222 = arith.cmpi eq, %arg1, %c0_i32_137 : i32
    %223 = arith.extui %222 : i1 to i32
    %c0_i32_138 = arith.constant 0 : i32
    %224 = arith.cmpi ne, %223, %c0_i32_138 : i32
    scf.if %224 {
      %c0_139 = arith.constant 0 : index
      %c0_140 = arith.constant 0 : index
      %225 = vector.load %arg7[%c0_139, %c0_140] : memref<16x128xf32, #tpu.memory_space<vmem>>, vector<16x128xf32>
      %cst_141 = arith.constant dense<0.000000e+00> : vector<16xf32>
      %226 = vector.multi_reduction <add>, %225, %cst_141 [1] : vector<16x128xf32> to vector<16xf32>
      %227 = vector.shape_cast %226 : vector<16xf32> to vector<16x1xf32>
      %c0_142 = arith.constant 0 : index
      %c0_143 = arith.constant 0 : index
      %c0_144 = arith.constant 0 : index
      %228 = vector.load %arg5[%c0_142, %c0_143, %c0_144] : memref<1x16x1xf32, #tpu.memory_space<vmem>>, vector<1x16x1xf32>
      %229 = vector.shape_cast %228 : vector<1x16x1xf32> to vector<16x1xf32>
      %230 = vector.shape_cast %227 : vector<16x1xf32> to vector<1x16x1xf32>
      tpu.vector_store %arg5[%c0_142, %c0_143, %c0_144], %230 {strides = array<i32>} : memref<1x16x1xf32, #tpu.memory_space<vmem>>, vector<1x16x1xf32>,
    } else {
    }
    return
  }
  func.func @transform_0(%arg0: i32, %arg1: i32) -> i32 {
    %c0_i32 = arith.constant 0 : i32
    %c0_i32_0 = arith.constant 0 : i32
    return %c0_i32 : i32
  }
  func.func @transform_1(%arg0: i32, %arg1: i32) -> (i32, i32) {
    %c1_i32 = arith.constant 1 : i32
    %0 = arith.muli %arg0, %c1_i32 : i32
    %1 = arith.addi %0, %arg1 : i32
    %c0_i32 = arith.constant 0 : i32
    %2 = arith.minsi %1, %c0_i32 : i32
    %c0_i32_0 = arith.constant 0 : i32
    %c0_i32_1 = arith.constant 0 : i32
    return %2, %c0_i32_0 : i32, i32
  }
  func.func @transform_2(%arg0: i32, %arg1: i32) -> (i32, i32) {
    %c1_i32 = arith.constant 1 : i32
    %0 = arith.muli %arg0, %c1_i32 : i32
    %1 = arith.addi %0, %arg1 : i32
    %c0_i32 = arith.constant 0 : i32
    %2 = arith.minsi %1, %c0_i32 : i32
    %c0_i32_0 = arith.constant 0 : i32
    %c0_i32_1 = arith.constant 0 : i32
    return %2, %c0_i32_0 : i32, i32
  }
  func.func @transform_3(%arg0: i32, %arg1: i32) -> (i32, i32, i32) {
    %c0_i32 = arith.constant 0 : i32
    %c0_i32_0 = arith.constant 0 : i32
    %c0_i32_1 = arith.constant 0 : i32
    return %arg0, %c0_i32, %c0_i32_0 : i32, i32, i32
  }
}

</mosaic_0001>

<llo_original>
// kernel: tpu_custom_call.1
$region0: #{tpu_custom_call.1}
  #allocation0 [shape = 'u32[]', space=smem, size = 0x4, offset = 0x4, fixed_abs, tag = 'smem constant byte address 0x4 - core index']
  #allocation1 [shape = 'u32[72,128]{1,0:T(1,128)}', space=vmem, size = 0x9000, scoped, tag = 'internal scratch']
  #allocation2 [shape = 'f32[16,128]{1,0:T(8,128)}', space=vmem, size = 0x2000, scoped, tag = 'scratch operand']
  #allocation3 [shape = 'f32[16,128]{1,0:T(8,128)}', space=vmem, size = 0x2000, scoped, tag = 'scratch operand']
  %s0 = inlined_call_operand.hbm [shape: f32[16], index: 0, kind: input, shape index: {}]
  %s1 = inlined_call_operand.hbm [shape: f32[16,128], index: 1, kind: input, shape index: {}]
  %s2 = inlined_call_operand.hbm [shape: f32[16,128], index: 2, kind: input, shape index: {}]
  %s3 = inlined_call_operand.vmem [shape: f32[1,16,1], index: 3, kind: output, shape index: {}]
  %s4 = sld [smem:[#allocation0]]
  $region46: #{tpu_custom_call.1} parent=0
    _
  %s6 = ssub.s32 1, %s4
  %s7 = scalar_select 0, %s6, %s4
  $region1: #{tpu_custom_call.1} parent=0
    #allocation4 [shape = 'u8[512]{0}', space=smem, size = 0x200, scoped, tag = 'input window, operand 0, single buffered']
    #allocation5 [shape = 's32[1]{0}', space=sflag, size = 0x4, scoped, tag = 'scoped memory for tpu_custom_call.1']
    #allocation6 [shape = 's32[1]{0}', space=sflag, size = 0x4, scoped, tag = 'scoped memory for tpu_custom_call.1']
    #allocation7 [shape = 'u8[8192]{0}', space=vmem, size = 0x2000, scoped, tag = 'input window, operand 1, single buffered']
    #allocation8 [shape = 'u8[8192]{0}', space=vmem, size = 0x2000, scoped, tag = 'input window, operand 2, single buffered']
    #allocation9 [shape = 's32[1]{0}', space=sflag, size = 0x4, scoped, tag = 'scoped memory for tpu_custom_call.1']
    %8 = vsyncpa [#allocation6], 0
    %9 = vsyncpa [#allocation5], 0
    %10 = vsyncpa [#allocation9], 0
    // Predicated region
    $region2: #{tpu_custom_call.1} parent=1 // pred_check
      _
    $region3: #{tpu_custom_call.1} parent=1 // pred_check_branch
      %12 = sbr.rel (0) target = $region5
    $region4: #{tpu_custom_call.1} parent=1 // pred_region
      %14 = vsyncadd [#allocation6], 0
      %s16 = sshll.u32 %s0, 4
      %s17 = int_to_ptr.hbm [resolvable:$true] %s16
      %19 = dma.hbm_to_smem %s17, 16, [#allocation4], [#allocation6]
    $region5: #{tpu_custom_call.1} parent=1 // pred_fallthru
      _
    // Predicated region
    $region6: #{tpu_custom_call.1} parent=1 // pred_check
      _
    $region7: #{tpu_custom_call.1} parent=1 // pred_check_branch
      %21 = sbr.rel (0) target = $region9
    $region8: #{tpu_custom_call.1} parent=1 // pred_region
      %s22 = sadd.s32 0, 0
      %p23 = scmp.lt.s32.totalorder %s22, 0
      %s24 = scalar_select %p23, %s22, 0
      %s25 = smul.u32 2, %s24
      %27 = vsyncadd [#allocation5], 0
      %s28 = smul.addr %s25, 8
      %s29 = scalar_lea.hbm %s1, %s28
      %s30 = sshll.u32 %s29, 4
      %s31 = int_to_ptr.hbm [resolvable:$true] %s30
      %s32 = sshll.u32 [#allocation7], 4
      %s33 = int_to_ptr.vmem [resolvable:$true] %s32
      %38 = dma.hbm_to_vmem [thread:$0]  %s31, 256, %s33, [#allocation5], 128, 128, 8
    $region9: #{tpu_custom_call.1} parent=1 // pred_fallthru
      _
    // Predicated region
    $region10: #{tpu_custom_call.1} parent=1 // pred_check
      _
    $region11: #{tpu_custom_call.1} parent=1 // pred_check_branch
      %40 = sbr.rel (0) target = $region13
    $region12: #{tpu_custom_call.1} parent=1 // pred_region
      %s41 = sadd.s32 0, 0
      %p42 = scmp.lt.s32.totalorder %s41, 0
      %s43 = scalar_select %p42, %s41, 0
      %s44 = smul.u32 2, %s43
      %46 = vsyncadd [#allocation9], 0
      %s47 = smul.addr %s44, 8
      %s48 = scalar_lea.hbm %s2, %s47
      %s49 = sshll.u32 %s48, 4
      %s50 = int_to_ptr.hbm [resolvable:$true] %s49
      %s51 = sshll.u32 [#allocation8], 4
      %s52 = int_to_ptr.vmem [resolvable:$true] %s51
      %57 = dma.hbm_to_vmem [thread:$0]  %s50, 256, %s52, [#allocation9], 128, 128, 8
    $region13: #{tpu_custom_call.1} parent=1 // pred_fallthru
      _
    // Predicated region
    $region14: #{tpu_custom_call.1} parent=1 // pred_check
      _
    $region15: #{tpu_custom_call.1} parent=1 // pred_check_branch
      %59 = sbr.rel (0) target = $region17
    $region16: #{tpu_custom_call.1} parent=1 // pred_region
      %61 = dma.done [#allocation6], 16
    $region17: #{tpu_custom_call.1} parent=1 // pred_fallthru
      _
    // Predicated region
    $region18: #{tpu_custom_call.1} parent=1 // pred_check
      _
    $region19: #{tpu_custom_call.1} parent=1 // pred_check_branch
      %63 = sbr.rel (0) target = $region21
    $region20: #{tpu_custom_call.1} parent=1 // pred_region
      %65 = dma.done [#allocation5], 256
    $region21: #{tpu_custom_call.1} parent=1 // pred_fallthru
      _
    // Predicated region
    $region22: #{tpu_custom_call.1} parent=1 // pred_check
      _
    $region23: #{tpu_custom_call.1} parent=1 // pred_check_branch
      %67 = sbr.rel (0) target = $region25
    $region24: #{tpu_custom_call.1} parent=1 // pred_region
      %69 = dma.done [#allocation9], 256
    $region25: #{tpu_custom_call.1} parent=1 // pred_fallthru
      _
    %70 = sfence
    %s71 = sadd.s32 0, 0
    %p72 = scmp.lt.s32.totalorder %s71, 0
    %s73 = scalar_select %p72, %s71, 0
    %s74 = smul.u32 2, %s73
    %s75 = sadd.s32 0, 0
    %p76 = scmp.lt.s32.totalorder %s75, 0
    %s77 = scalar_select %p76, %s75, 0
    %s78 = smul.u32 2, %s77
    %p79 = scmp.eq.s32.totalorder 0, 0
    // Predicated region
    $region26: #{tpu_custom_call.1} parent=1 // pred_check
      %p80 = pneg %p79
    $region27: #{tpu_custom_call.1} parent=1 // pred_check_branch
      %82 = sbr.rel (%p80) target = $region29
    $region28: #{tpu_custom_call.1} parent=1 // pred_region
      %83 = vst [vmem:[#allocation3] sm:$0xff] 0.0
      %84 = vst [vmem:[#allocation3 + $0x8] sm:$0xff] 0.0
    $region29: #{tpu_custom_call.1} parent=1 // pred_fallthru
      _
    %v85 = vld [vmem:[#allocation7] sm:$0xff]
    %v86 = vld [vmem:[#allocation7 + $0x8] sm:$0xff]
    %v87 = vld [vmem:[#allocation8] sm:$0xff]
    %v88 = vld [vmem:[#allocation8 + $0x8] sm:$0xff]
    %v89 = vsub.f32 %v85, %v87
    %v90 = vsub.f32 %v86, %v88
    %91 = vst [vmem:[#allocation2] sm:$0xff] %v89
    %92 = vst [vmem:[#allocation2 + $0x8] sm:$0xff] %v90
    %s93 = sadd.s32 0, 0
    %s94 = smul.u32 %s93, 2048
    %s95 = sadd.s32 %s94, 2048
    %p96 = scmp.gt.s32.totalorder %s95, 2048
    // Predicated region
    $region30: #{tpu_custom_call.1} parent=1 // pred_check
      %p97 = pneg %p96
    $region31: #{tpu_custom_call.1} parent=1 // pred_check_branch
      %99 = sbr.rel (%p97) target = $region33
    $region32: #{tpu_custom_call.1} parent=1 // pred_region
      %v100 = vlaneseq
      %v101 = vshrl.u32 %v100, 7
      %v102 = vadd.s32 %v101, 8
      %v103 = vlaneseq
      %v104 = vand.u32 %v103, 127
      %v105 = vmul.u32 %v101, 128
      %v106 = vmul.u32 %v102, 128
      %v107 = vstv %s94
      %v108 = vadd.s32 %v107, %v105
      %v109 = vadd.s32 %v107, %v106
      %v110 = vadd.s32 %v108, %v104
      %v111 = vadd.s32 %v109, %v104
      %vm112 = vcmp.lt.s32.totalorder %v110, 2048
      %vm113 = vcmp.lt.s32.totalorder %v111, 2048
      %v114 = vld [vmem:[#allocation2] sm:$0xff]
      %v115 = vld [vmem:[#allocation2 + $0x8] sm:$0xff]
      %v116 = vsel %vm112, %v114, 1e+19
      %v117 = vsel %vm113, %v115, 1e+19
      %118 = vst [vmem:[#allocation2] sm:$0xff] %v116
      %119 = vst [vmem:[#allocation2 + $0x8] sm:$0xff] %v117
    $region33: #{tpu_custom_call.1} parent=1 // pred_fallthru
      _
    %v120 = vld [vmem:[#allocation2] sm:$0xff]
    %v121 = vld [vmem:[#allocation2 + $0x8] sm:$0xff]
    %s122 = sld [smem:[#allocation4]]
    %v123 = vstv %s122
    %v124 = vsub.f32 %v120, %v123
    %v125 = vsub.f32 %v121, %v123
    %v126 = vmul.f32 %v124, %v124
    %v127 = vmul.f32 %v125, %v125
    %v128 = vmul.f32 %v126, -0.03125
    %v129 = vmul.f32 %v127, -0.03125
    %v130 = vmul.f32 %v128, 1.442695
    %v131 = vpow.pop %v130
    %v132 = vmul.f32 %v129, 1.442695
    %v133 = vpow.pop %v132
    %v134 = vld [vmem:[#allocation3] sm:$0x1]
    %v135 = vadd.f32 %v131, %v133
    %v136 = vrot.slane %v135, 4
    %v137 = vadd.f32 %v135, %v136
    %v138 = vrot.slane %v137, 2
    %v139 = vadd.f32 %v137, %v138
    %v140 = vrot.slane %v139, 1
    %v141 = vadd.f32 %v139, %v140
    %v142 = vadd.f32 %v134, %v141
    %143 = vst [vmem:[#allocation3] sm:$0x1] %v142
    %v144 = vld [vmem:[#allocation2] sm:$0xff]
    %v145 = vld [vmem:[#allocation2 + $0x8] sm:$0xff]
    %s146 = sld [smem:[#allocation4 + $0x1]]
    %v147 = vstv %s146
    %v148 = vsub.f32 %v144, %v147
    %v149 = vsub.f32 %v145, %v147
    %v150 = vmul.f32 %v148, %v148
    %v151 = vmul.f32 %v149, %v149
    %v152 = vmul.f32 %v150, -0.03125
    %v153 = vmul.f32 %v151, -0.03125
    %v154 = vmul.f32 %v152, 1.442695
    %v155 = vpow.pop %v154
    %v156 = vmul.f32 %v153, 1.442695
    %v157 = vpow.pop %v156
    %v158 = vld [vmem:[#allocation3 + $0x1] sm:$0x1]
    %v159 = vadd.f32 %v155, %v157
    %v160 = vrot.slane %v159, 4
    %v161 = vadd.f32 %v159, %v160
    %v162 = vrot.slane %v161, 2
    %v163 = vadd.f32 %v161, %v162
    %v164 = vrot.slane %v163, 1
    %v165 = vadd.f32 %v163, %v164
    %v166 = vadd.f32 %v158, %v165
    %167 = vst [vmem:[#allocation3 + $0x1] sm:$0x1] %v166
    %v168 = vld [vmem:[#allocation2] sm:$0xff]
    %v169 = vld [vmem:[#allocation2 + $0x8] sm:$0xff]
    %s170 = sld [smem:[#allocation4 + $0x2]]
    %v171 = vstv %s170
    %v172 = vsub.f32 %v168, %v171
    %v173 = vsub.f32 %v169, %v171
    %v174 = vmul.f32 %v172, %v172
    %v175 = vmul.f32 %v173, %v173
    %v176 = vmul.f32 %v174, -0.03125
    %v177 = vmul.f32 %v175, -0.03125
    %v178 = vmul.f32 %v176, 1.442695
    %v179 = vpow.pop %v178
    %v180 = vmul.f32 %v177, 1.442695
    %v181 = vpow.pop %v180
    %v182 = vld [vmem:[#allocation3 + $0x2] sm:$0x1]
    %v183 = vadd.f32 %v179, %v181
    %v184 = vrot.slane %v183, 4
    %v185 = vadd.f32 %v183, %v184
    %v186 = vrot.slane %v185, 2
    %v187 = vadd.f32 %v185, %v186
    %v188 = vrot.slane %v187, 1
    %v189 = vadd.f32 %v187, %v188
    %v190 = vadd.f32 %v182, %v189
    %191 = vst [vmem:[#allocation3 + $0x2] sm:$0x1] %v190
    %v192 = vld [vmem:[#allocation2] sm:$0xff]
    %v193 = vld [vmem:[#allocation2 + $0x8] sm:$0xff]
    %s194 = sld [smem:[#allocation4 + $0x3]]
    %v195 = vstv %s194
    %v196 = vsub.f32 %v192, %v195
    %v197 = vsub.f32 %v193, %v195
    %v198 = vmul.f32 %v196, %v196
    %v199 = vmul.f32 %v197, %v197
    %v200 = vmul.f32 %v198, -0.03125
    %v201 = vmul.f32 %v199, -0.03125
    %v202 = vmul.f32 %v200, 1.442695
    %v203 = vpow.pop %v202
    %v204 = vmul.f32 %v201, 1.442695
    %v205 = vpow.pop %v204
    %v206 = vld [vmem:[#allocation3 + $0x3] sm:$0x1]
    %v207 = vadd.f32 %v203, %v205
    %v208 = vrot.slane %v207, 4
    %v209 = vadd.f32 %v207, %v208
    %v210 = vrot.slane %v209, 2
    %v211 = vadd.f32 %v209, %v210
    %v212 = vrot.slane %v211, 1
    %v213 = vadd.f32 %v211, %v212
    %v214 = vadd.f32 %v206, %v213
    %215 = vst [vmem:[#allocation3 + $0x3] sm:$0x1] %v214
    %v216 = vld [vmem:[#allocation2] sm:$0xff]
    %v217 = vld [vmem:[#allocation2 + $0x8] sm:$0xff]
    %s218 = sld [smem:[#allocation4 + $0x4]]
    %v219 = vstv %s218
    %v220 = vsub.f32 %v216, %v219
    %v221 = vsub.f32 %v217, %v219
    %v222 = vmul.f32 %v220, %v220
    %v223 = vmul.f32 %v221, %v221
    %v224 = vmul.f32 %v222, -0.03125
    %v225 = vmul.f32 %v223, -0.03125
    %v226 = vmul.f32 %v224, 1.442695
    %v227 = vpow.pop %v226
    %v228 = vmul.f32 %v225, 1.442695
    %v229 = vpow.pop %v228
    %v230 = vld [vmem:[#allocation3 + $0x4] sm:$0x1]
    %v231 = vadd.f32 %v227, %v229
    %v232 = vrot.slane %v231, 4
    %v233 = vadd.f32 %v231, %v232
    %v234 = vrot.slane %v233, 2
    %v235 = vadd.f32 %v233, %v234
    %v236 = vrot.slane %v235, 1
    %v237 = vadd.f32 %v235, %v236
    %v238 = vadd.f32 %v230, %v237
    %239 = vst [vmem:[#allocation3 + $0x4] sm:$0x1] %v238
    %v240 = vld [vmem:[#allocation2] sm:$0xff]
    %v241 = vld [vmem:[#allocation2 + $0x8] sm:$0xff]
    %s242 = sld [smem:[#allocation4 + $0x5]]
    %v243 = vstv %s242
    %v244 = vsub.f32 %v240, %v243
    %v245 = vsub.f32 %v241, %v243
    %v246 = vmul.f32 %v244, %v244
    %v247 = vmul.f32 %v245, %v245
    %v248 = vmul.f32 %v246, -0.03125
    %v249 = vmul.f32 %v247, -0.03125
    %v250 = vmul.f32 %v248, 1.442695
    %v251 = vpow.pop %v250
    %v252 = vmul.f32 %v249, 1.442695
    %v253 = vpow.pop %v252
    %v254 = vld [vmem:[#allocation3 + $0x5] sm:$0x1]
    %v255 = vadd.f32 %v251, %v253
    %v256 = vrot.slane %v255, 4
    %v257 = vadd.f32 %v255, %v256
    %v258 = vrot.slane %v257, 2
    %v259 = vadd.f32 %v257, %v258
    %v260 = vrot.slane %v259, 1
    %v261 = vadd.f32 %v259, %v260
    %v262 = vadd.f32 %v254, %v261
    %263 = vst [vmem:[#allocation3 + $0x5] sm:$0x1] %v262
    %v264 = vld [vmem:[#allocation2] sm:$0xff]
    %v265 = vld [vmem:[#allocation2 + $0x8] sm:$0xff]
    %s266 = sld [smem:[#allocation4 + $0x6]]
    %v267 = vstv %s266
    %v268 = vsub.f32 %v264, %v267
    %v269 = vsub.f32 %v265, %v267
    %v270 = vmul.f32 %v268, %v268
    %v271 = vmul.f32 %v269, %v269
    %v272 = vmul.f32 %v270, -0.03125
    %v273 = vmul.f32 %v271, -0.03125
    %v274 = vmul.f32 %v272, 1.442695
    %v275 = vpow.pop %v274
    %v276 = vmul.f32 %v273, 1.442695
    %v277 = vpow.pop %v276
    %v278 = vld [vmem:[#allocation3 + $0x6] sm:$0x1]
    %v279 = vadd.f32 %v275, %v277
    %v280 = vrot.slane %v279, 4
    %v281 = vadd.f32 %v279, %v280
    %v282 = vrot.slane %v281, 2
    %v283 = vadd.f32 %v281, %v282
    %v284 = vrot.slane %v283, 1
    %v285 = vadd.f32 %v283, %v284
    %v286 = vadd.f32 %v278, %v285
    %287 = vst [vmem:[#allocation3 + $0x6] sm:$0x1] %v286
    %v288 = vld [vmem:[#allocation2] sm:$0xff]
    %v289 = vld [vmem:[#allocation2 + $0x8] sm:$0xff]
    %s290 = sld [smem:[#allocation4 + $0x7]]
    %v291 = vstv %s290
    %v292 = vsub.f32 %v288, %v291
    %v293 = vsub.f32 %v289, %v291
    %v294 = vmul.f32 %v292, %v292
    %v295 = vmul.f32 %v293, %v293
    %v296 = vmul.f32 %v294, -0.03125
    %v297 = vmul.f32 %v295, -0.03125
    %v298 = vmul.f32 %v296, 1.442695
    %v299 = vpow.pop %v298
    %v300 = vmul.f32 %v297, 1.442695
    %v301 = vpow.pop %v300
    %v302 = vld [vmem:[#allocation3 + $0x7] sm:$0x1]
    %v303 = vadd.f32 %v299, %v301
    %v304 = vrot.slane %v303, 4
    %v305 = vadd.f32 %v303, %v304
    %v306 = vrot.slane %v305, 2
    %v307 = vadd.f32 %v305, %v306
    %v308 = vrot.slane %v307, 1
    %v309 = vadd.f32 %v307, %v308
    %v310 = vadd.f32 %v302, %v309
    %311 = vst [vmem:[#allocation3 + $0x7] sm:$0x1] %v310
    %v312 = vld [vmem:[#allocation2] sm:$0xff]
    %v313 = vld [vmem:[#allocation2 + $0x8] sm:$0xff]
    %s314 = sld [smem:[#allocation4 + $0x8]]
    %v315 = vstv %s314
    %v316 = vsub.f32 %v312, %v315
    %v317 = vsub.f32 %v313, %v315
    %v318 = vmul.f32 %v316, %v316
    %v319 = vmul.f32 %v317, %v317
    %v320 = vmul.f32 %v318, -0.03125
    %v321 = vmul.f32 %v319, -0.03125
    %v322 = vmul.f32 %v320, 1.442695
    %v323 = vpow.pop %v322
    %v324 = vmul.f32 %v321, 1.442695
    %v325 = vpow.pop %v324
    %v326 = vld [vmem:[#allocation3 + $0x8] sm:$0x1]
    %v327 = vadd.f32 %v323, %v325
    %v328 = vrot.slane %v327, 4
    %v329 = vadd.f32 %v327, %v328
    %v330 = vrot.slane %v329, 2
    %v331 = vadd.f32 %v329, %v330
    %v332 = vrot.slane %v331, 1
    %v333 = vadd.f32 %v331, %v332
    %v334 = vadd.f32 %v326, %v333
    %335 = vst [vmem:[#allocation3 + $0x8] sm:$0x1] %v334
    %v336 = vld [vmem:[#allocation2] sm:$0xff]
    %v337 = vld [vmem:[#allocation2 + $0x8] sm:$0xff]
    %s338 = sld [smem:[#allocation4 + $0x9]]
    %v339 = vstv %s338
    %v340 = vsub.f32 %v336, %v339
    %v341 = vsub.f32 %v337, %v339
    %v342 = vmul.f32 %v340, %v340
    %v343 = vmul.f32 %v341, %v341
    %v344 = vmul.f32 %v342, -0.03125
    %v345 = vmul.f32 %v343, -0.03125
    %v346 = vmul.f32 %v344, 1.442695
    %v347 = vpow.pop %v346
    %v348 = vmul.f32 %v345, 1.442695
    %v349 = vpow.pop %v348
    %v350 = vld [vmem:[#allocation3 + $0x9] sm:$0x1]
    %v351 = vadd.f32 %v347, %v349
    %v352 = vrot.slane %v351, 4
    %v353 = vadd.f32 %v351, %v352
    %v354 = vrot.slane %v353, 2
    %v355 = vadd.f32 %v353, %v354
    %v356 = vrot.slane %v355, 1
    %v357 = vadd.f32 %v355, %v356
    %v358 = vadd.f32 %v350, %v357
    %359 = vst [vmem:[#allocation3 + $0x9] sm:$0x1] %v358
    %v360 = vld [vmem:[#allocation2] sm:$0xff]
    %v361 = vld [vmem:[#allocation2 + $0x8] sm:$0xff]
    %s362 = sld [smem:[#allocation4 + $0xa]]
    %v363 = vstv %s362
    %v364 = vsub.f32 %v360, %v363
    %v365 = vsub.f32 %v361, %v363
    %v366 = vmul.f32 %v364, %v364
    %v367 = vmul.f32 %v365, %v365
    %v368 = vmul.f32 %v366, -0.03125
    %v369 = vmul.f32 %v367, -0.03125
    %v370 = vmul.f32 %v368, 1.442695
    %v371 = vpow.pop %v370
    %v372 = vmul.f32 %v369, 1.442695
    %v373 = vpow.pop %v372
    %v374 = vld [vmem:[#allocation3 + $0xa] sm:$0x1]
    %v375 = vadd.f32 %v371, %v373
    %v376 = vrot.slane %v375, 4
    %v377 = vadd.f32 %v375, %v376
    %v378 = vrot.slane %v377, 2
    %v379 = vadd.f32 %v377, %v378
    %v380 = vrot.slane %v379, 1
    %v381 = vadd.f32 %v379, %v380
    %v382 = vadd.f32 %v374, %v381
    %383 = vst [vmem:[#allocation3 + $0xa] sm:$0x1] %v382
    %v384 = vld [vmem:[#allocation2] sm:$0xff]
    %v385 = vld [vmem:[#allocation2 + $0x8] sm:$0xff]
    %s386 = sld [smem:[#allocation4 + $0xb]]
    %v387 = vstv %s386
    %v388 = vsub.f32 %v384, %v387
    %v389 = vsub.f32 %v385, %v387
    %v390 = vmul.f32 %v388, %v388
    %v391 = vmul.f32 %v389, %v389
    %v392 = vmul.f32 %v390, -0.03125
    %v393 = vmul.f32 %v391, -0.03125
    %v394 = vmul.f32 %v392, 1.442695
    %v395 = vpow.pop %v394
    %v396 = vmul.f32 %v393, 1.442695
    %v397 = vpow.pop %v396
    %v398 = vld [vmem:[#allocation3 + $0xb] sm:$0x1]
    %v399 = vadd.f32 %v395, %v397
    %v400 = vrot.slane %v399, 4
    %v401 = vadd.f32 %v399, %v400
    %v402 = vrot.slane %v401, 2
    %v403 = vadd.f32 %v401, %v402
    %v404 = vrot.slane %v403, 1
    %v405 = vadd.f32 %v403, %v404
    %v406 = vadd.f32 %v398, %v405
    %407 = vst [vmem:[#allocation3 + $0xb] sm:$0x1] %v406
    %v408 = vld [vmem:[#allocation2] sm:$0xff]
    %v409 = vld [vmem:[#allocation2 + $0x8] sm:$0xff]
    %s410 = sld [smem:[#allocation4 + $0xc]]
    %v411 = vstv %s410
    %v412 = vsub.f32 %v408, %v411
    %v413 = vsub.f32 %v409, %v411
    %v414 = vmul.f32 %v412, %v412
    %v415 = vmul.f32 %v413, %v413
    %v416 = vmul.f32 %v414, -0.03125
    %v417 = vmul.f32 %v415, -0.03125
    %v418 = vmul.f32 %v416, 1.442695
    %v419 = vpow.pop %v418
    %v420 = vmul.f32 %v417, 1.442695
    %v421 = vpow.pop %v420
    %v422 = vld [vmem:[#allocation3 + $0xc] sm:$0x1]
    %v423 = vadd.f32 %v419, %v421
    %v424 = vrot.slane %v423, 4
    %v425 = vadd.f32 %v423, %v424
    %v426 = vrot.slane %v425, 2
    %v427 = vadd.f32 %v425, %v426
    %v428 = vrot.slane %v427, 1
    %v429 = vadd.f32 %v427, %v428
    %v430 = vadd.f32 %v422, %v429
    %431 = vst [vmem:[#allocation3 + $0xc] sm:$0x1] %v430
    %v432 = vld [vmem:[#allocation2] sm:$0xff]
    %v433 = vld [vmem:[#allocation2 + $0x8] sm:$0xff]
    %s434 = sld [smem:[#allocation4 + $0xd]]
    %v435 = vstv %s434
    %v436 = vsub.f32 %v432, %v435
    %v437 = vsub.f32 %v433, %v435
    %v438 = vmul.f32 %v436, %v436
    %v439 = vmul.f32 %v437, %v437
    %v440 = vmul.f32 %v438, -0.03125
    %v441 = vmul.f32 %v439, -0.03125
    %v442 = vmul.f32 %v440, 1.442695
    %v443 = vpow.pop %v442
    %v444 = vmul.f32 %v441, 1.442695
    %v445 = vpow.pop %v444
    %v446 = vld [vmem:[#allocation3 + $0xd] sm:$0x1]
    %v447 = vadd.f32 %v443, %v445
    %v448 = vrot.slane %v447, 4
    %v449 = vadd.f32 %v447, %v448
    %v450 = vrot.slane %v449, 2
    %v451 = vadd.f32 %v449, %v450
    %v452 = vrot.slane %v451, 1
    %v453 = vadd.f32 %v451, %v452
    %v454 = vadd.f32 %v446, %v453
    %455 = vst [vmem:[#allocation3 + $0xd] sm:$0x1] %v454
    %v456 = vld [vmem:[#allocation2] sm:$0xff]
    %v457 = vld [vmem:[#allocation2 + $0x8] sm:$0xff]
    %s458 = sld [smem:[#allocation4 + $0xe]]
    %v459 = vstv %s458
    %v460 = vsub.f32 %v456, %v459
    %v461 = vsub.f32 %v457, %v459
    %v462 = vmul.f32 %v460, %v460
    %v463 = vmul.f32 %v461, %v461
    %v464 = vmul.f32 %v462, -0.03125
    %v465 = vmul.f32 %v463, -0.03125
    %v466 = vmul.f32 %v464, 1.442695
    %v467 = vpow.pop %v466
    %v468 = vmul.f32 %v465, 1.442695
    %v469 = vpow.pop %v468
    %v470 = vld [vmem:[#allocation3 + $0xe] sm:$0x1]
    %v471 = vadd.f32 %v467, %v469
    %v472 = vrot.slane %v471, 4
    %v473 = vadd.f32 %v471, %v472
    %v474 = vrot.slane %v473, 2
    %v475 = vadd.f32 %v473, %v474
    %v476 = vrot.slane %v475, 1
    %v477 = vadd.f32 %v475, %v476
    %v478 = vadd.f32 %v470, %v477
    %479 = vst [vmem:[#allocation3 + $0xe] sm:$0x1] %v478
    %v480 = vld [vmem:[#allocation2] sm:$0xff]
    %v481 = vld [vmem:[#allocation2 + $0x8] sm:$0xff]
    %s482 = sld [smem:[#allocation4 + $0xf]]
    %v483 = vstv %s482
    %v484 = vsub.f32 %v480, %v483
    %v485 = vsub.f32 %v481, %v483
    %v486 = vmul.f32 %v484, %v484
    %v487 = vmul.f32 %v485, %v485
    %v488 = vmul.f32 %v486, -0.03125
    %v489 = vmul.f32 %v487, -0.03125
    %v490 = vmul.f32 %v488, 1.442695
    %v491 = vpow.pop %v490
    %v492 = vmul.f32 %v489, 1.442695
    %v493 = vpow.pop %v492
    %v494 = vld [vmem:[#allocation3 + $0xf] sm:$0x1]
    %v495 = vadd.f32 %v491, %v493
    %v496 = vrot.slane %v495, 4
    %v497 = vadd.f32 %v495, %v496
    %v498 = vrot.slane %v497, 2
    %v499 = vadd.f32 %v497, %v498
    %v500 = vrot.slane %v499, 1
    %v501 = vadd.f32 %v499, %v500
    %v502 = vadd.f32 %v494, %v501
    %503 = vst [vmem:[#allocation3 + $0xf] sm:$0x1] %v502
    // Predicated region
    $region34: #{tpu_custom_call.1} parent=1 // pred_check
      %p504 = pneg %p79
    $region35: #{tpu_custom_call.1} parent=1 // pred_check_branch
      %506 = sbr.rel (%p504) target = $region37
    $region36: #{tpu_custom_call.1} parent=1 // pred_region
      %v507 = vld [vmem:[#allocation3] sm:$0xff]
      %v508 = vld [vmem:[#allocation3 + $0x8] sm:$0xff]
      %509 = vadd.xlane.f32.xlu0 %v507
      %v510 = vpop.xlane.xlu0 %509
      %511 = vadd.xlane.f32.xlu0 %v508
      %v512 = vpop.xlane.xlu0 %511
      %vm513 = vcmask 7168
      %514 = vst.msk [vmem:[%s3] sm:$0xff] %vm513, %v510
      %515 = vst.msk [vmem:[%s3 + $0x8] sm:$0xff] %vm513, %v512
    $region37: #{tpu_custom_call.1} parent=1 // pred_fallthru
      _
    // Predicated region
    $region38: #{tpu_custom_call.1} parent=1 // pred_check
      _
    $region39: #{tpu_custom_call.1} parent=1 // pred_check_branch
      %517 = sbr.rel (0) target = $region41
    $region40: #{tpu_custom_call.1} parent=1 // pred_region
      _
    $region41: #{tpu_custom_call.1} parent=1 // pred_fallthru
      _
    // Predicated region
    $region42: #{tpu_custom_call.1} parent=1 // pred_check
      _
    $region43: #{tpu_custom_call.1} parent=1 // pred_check_branch
      %519 = sbr.rel (0) target = $region45
    $region44: #{tpu_custom_call.1} parent=1 // pred_region
      _
    $region45: #{tpu_custom_call.1} parent=1 // pred_fallthru
      _
    %520 = vsyncpa [#allocation5], 1
    %521 = vsyncpa [#allocation9], 1
    %522 = vsyncpa [#allocation6], 1

</llo_original>
